<compile_context>
chip_gen: v7x
topology: tpu7x:2x2x1
jax: 0.10.0
libtpu: 0.0.40
codegen_flags: <defaults>
</compile_context>

<pallas_src>
import functools
import jax
import jax.numpy as jnp
from jax.experimental import pallas as pl
from jax.experimental.pallas import tpu as pltpu


def _gelu_tanh(x):
    # GELU, tanh approximation (matches torch.nn.GELU(approximate='tanh')); in f32.
    c = 0.7978845608028654  # sqrt(2/pi)
    return 0.5 * x * (1.0 + jnp.tanh(c * (x + 0.044715 * x * x * x)))


def ffn_kernel(x_ref, wfc_ref, bfc_ref, wproj_ref, bproj_ref, o_ref, acc_ref):
    # x_ref: (tm, C), wfc_ref: (C, th), bfc_ref: (1, th),
    # wproj_ref: (th, C), bproj_ref: (1, C), o_ref: (tm, C), acc_ref: (tm, C) f32
    h_idx = pl.program_id(1)

    @pl.when(h_idx == 0)
    def _():
        # Fold the c_proj bias into the accumulator init (epilogue becomes a cast).
        acc_ref[...] = jnp.broadcast_to(
            bproj_ref[...].astype(jnp.float32), acc_ref.shape)

    x = x_ref[...].astype(wfc_ref.dtype)
    # First matmul on this hidden chunk; (tm,th)+(1,th) bias add is an implicit
    # VPU broadcast; GELU stays in f32 (tanh on the EUP slot).
    h = (jnp.dot(x, wfc_ref[...], preferred_element_type=jnp.float32)
         + bfc_ref[...].astype(jnp.float32))
    g = _gelu_tanh(h)
    # Partial second matmul, accumulated in f32 scratch across the H grid axis.
    acc_ref[...] += jnp.dot(g.astype(wproj_ref.dtype), wproj_ref[...],
                            preferred_element_type=jnp.float32)

    @pl.when(h_idx == pl.num_programs(1) - 1)
    def _():
        o_ref[...] = acc_ref[...].astype(o_ref.dtype)


def _round_up(x, m):
    return (x + m - 1) // m * m


def _pick_chunk(total, preferred):
    # Largest chunk <= preferred that divides `total`; fall back to `total`.
    for cand in (preferred, 512, 384, 256, 128):
        if cand <= total and total % cand == 0:
            return cand
    return total


@functools.partial(jax.jit, static_argnames=("tm", "th"))
def feed_forward(x, w_fc, b_fc, w_proj, b_proj, *, tm=256, th=512):
    """x: (B, T, C). w_fc: (C, 4C), b_fc: (4C,), w_proj: (4C, C), b_proj: (C,).

    Weights are stored pre-transposed as (in, out); pass them as bf16 for
    production shapes to halve HBM/VMEM traffic (accumulation stays f32).
    """
    B, T, C = x.shape
    H = w_fc.shape[1]
    M = B * T

    # Row tile: large enough to fill the MXU M dim and amortize weight streaming,
    # clamped so tiny shapes don't waste compute; always a multiple of 8 (f32 sublane).
    tm_eff = min(tm, _round_up(M, 8))
    M_pad = _round_up(M, tm_eff)          # pad rows instead of asserting M % tm == 0

    # Hidden chunk: bounds the live (tm, th) intermediate / VMEM pressure.
    th_eff = _pick_chunk(H, th)

    x2 = x.reshape(M, C)
    if M_pad != M:
        x2 = jnp.pad(x2, ((0, M_pad - M), (0, 0)))
    b_fc2 = b_fc.reshape(1, H)
    b_proj2 = b_proj.reshape(1, C)

    out = pl.pallas_call(
        ffn_kernel,
        out_shape=jax.ShapeDtypeStruct((M_pad, C), x.dtype),
        grid_spec=pltpu.PrefetchScalarGridSpec(
            num_scalar_prefetch=0,
            grid=(M_pad // tm_eff, H // th_eff),       # H last => accumulator resident
            in_specs=[
                pl.BlockSpec((tm_eff, C), lambda i, h: (i, 0)),   # x row tile (resident over h)
                pl.BlockSpec((C, th_eff), lambda i, h: (0, h)),   # W_fc column chunk
                pl.BlockSpec((1, th_eff), lambda i, h: (0, h)),   # b_fc chunk
                pl.BlockSpec((th_eff, C), lambda i, h: (h, 0)),   # W_proj row chunk
                pl.BlockSpec((1, C), lambda i, h: (0, 0)),        # b_proj
            ],
            out_specs=pl.BlockSpec((tm_eff, C), lambda i, h: (i, 0)),
            scratch_shapes=[pltpu.VMEM((tm_eff, C), jnp.float32)],
        ),
        compiler_params=pltpu.CompilerParams(
            dimension_semantics=("parallel", "arbitrary"),
            vmem_limit_bytes=64 * 1024 * 1024,
        ),
    )(x2, w_fc, b_fc2, w_proj, b_proj2)

    if M_pad != M:
        out = out[:M]
    return out.reshape(B, T, C)


if __name__ == "__main__":
    # Small but lane-dense config: n_embed = 128 -> hidden = 512 (full-128-lane stores).
    B, T, C = 2, 8, 128
    H = 4 * C

    key = jax.random.PRNGKey(0)
    kx, k1, k2, k3, k4 = jax.random.split(key, 5)

    x = jax.random.normal(kx, (B, T, C), dtype=jnp.float32)
    # nn.Linear(in, out) weight is (out, in); store pre-transposed (in, out) here.
    bound_fc = 1.0 / (C ** 0.5)
    bound_pr = 1.0 / (H ** 0.5)
    w_fc = jax.random.uniform(k1, (C, H), jnp.float32, -bound_fc, bound_fc)
    b_fc = jax.random.uniform(k2, (H,), jnp.float32, -bound_fc, bound_fc)
    w_proj = jax.random.uniform(k3, (H, C), jnp.float32, -bound_pr, bound_pr)
    b_proj = jax.random.uniform(k4, (C,), jnp.float32, -bound_pr, bound_pr)

    y = feed_forward(x, w_fc, b_fc, w_proj, b_proj)
    jax.block_until_ready(y)

    # Pure-JAX reference check (tanh GELU, same constants as torch approximate='tanh')
    h_ref = x.reshape(-1, C) @ w_fc + b_fc
    g_ref = 0.5 * h_ref * (1.0 + jnp.tanh(0.7978845608028654 *
                                          (h_ref + 0.044715 * h_ref ** 3)))
    y_ref = (g_ref @ w_proj + b_proj).reshape(B, T, C)
    assert jnp.allclose(y, y_ref, atol=1e-4, rtol=1e-4), "mismatch vs reference"

    print("KERNEL_OK")
</pallas_src>

<mosaic_0001>
module attributes {stable_mosaic.version = 11 : i64} {
  func.func @ffn_kernel(%arg0: i32, %arg1: i32, %arg2: memref<16x128xf32, #tpu.memory_space<vmem>>, %arg3: memref<128x512xf32, #tpu.memory_space<vmem>>, %arg4: memref<1x512xf32, #tpu.memory_space<vmem>>, %arg5: memref<512x128xf32, #tpu.memory_space<vmem>>, %arg6: memref<1x128xf32, #tpu.memory_space<vmem>>, %arg7: memref<16x128xf32, #tpu.memory_space<vmem>>, %arg8: memref<16x128xf32, #tpu.memory_space<vmem>>) attributes {dimension_semantics = [#tpu.dimension_semantics<parallel>, #tpu.dimension_semantics<arbitrary>], iteration_bounds = array<i64: 1, 1>, scalar_prefetch = 0 : i64, scratch_operands = 1 : i64, tpu.core_type = #tpu.core_type<tc>, window_params = [{transform_indices = @transform_0, window_bounds = array<i64: 16, 128>}, {transform_indices = @transform_1, window_bounds = array<i64: 128, 512>}, {transform_indices = @transform_2, window_bounds = array<i64: 1, 512>}, {transform_indices = @transform_3, window_bounds = array<i64: 512, 128>}, {pipeline_mode = #tpu.pipeline_mode<synchronous>, transform_indices = @transform_4, window_bounds = array<i64: 1, 128>}, {transform_indices = @transform_5, window_bounds = array<i64: 16, 128>}]} {
    %c0_i32 = arith.constant 0 : i32
    %0 = arith.cmpi eq, %arg1, %c0_i32 : i32
    %1 = arith.extui %0 : i1 to i32
    %c0_i32_0 = arith.constant 0 : i32
    %2 = arith.cmpi ne, %1, %c0_i32_0 : i32
    scf.if %2 {
      %c0_19 = arith.constant 0 : index
      %c0_20 = arith.constant 0 : index
      %30 = vector.load %arg6[%c0_19, %c0_20] : memref<1x128xf32, #tpu.memory_space<vmem>>, vector<1x128xf32>
      %31 = vector.shape_cast %30 : vector<1x128xf32> to vector<1x128xf32>
      %32 = vector.broadcast %31 : vector<1x128xf32> to vector<16x128xf32>
      %c0_21 = arith.constant 0 : index
      %c0_22 = arith.constant 0 : index
      %33 = vector.load %arg8[%c0_21, %c0_22] : memref<16x128xf32, #tpu.memory_space<vmem>>, vector<16x128xf32>
      tpu.vector_store %arg8[%c0_21, %c0_22], %32 {strides = array<i32>} : memref<16x128xf32, #tpu.memory_space<vmem>>, vector<16x128xf32>,
    } else {
    }
    %c0 = arith.constant 0 : index
    %c0_1 = arith.constant 0 : index
    %3 = vector.load %arg2[%c0, %c0_1] : memref<16x128xf32, #tpu.memory_space<vmem>>, vector<16x128xf32>
    %c0_2 = arith.constant 0 : index
    %c0_3 = arith.constant 0 : index
    %4 = vector.load %arg3[%c0_2, %c0_3] : memref<128x512xf32, #tpu.memory_space<vmem>>, vector<128x512xf32>
    %cst = arith.constant dense<0.000000e+00> : vector<16x512xf32>
    %5 = tpu.matmul %3, %4, %cst {dimension_numbers = #tpu.dot_dimension_numbers<[1], [0], [0], [1], [0, 0, 1, 1], [], []>} : vector<16x128xf32>, vector<128x512xf32>, vector<16x512xf32> -> vector<16x512xf32>
    %c0_4 = arith.constant 0 : index
    %c0_5 = arith.constant 0 : index
    %6 = vector.load %arg4[%c0_4, %c0_5] : memref<1x512xf32, #tpu.memory_space<vmem>>, vector<1x512xf32>
    %7 = vector.broadcast %6 : vector<1x512xf32> to vector<16x512xf32>
    %8 = arith.addf %5, %7 : vector<16x512xf32>
    %cst_6 = arith.constant 5.000000e-01 : f32
    %9 = vector.broadcast %cst_6 : f32 to vector<16x512xf32>
    %10 = arith.mulf %9, %8 : vector<16x512xf32>
    %cst_7 = arith.constant 4.471500e-02 : f32
    %11 = vector.broadcast %cst_7 : f32 to vector<16x512xf32>
    %12 = arith.mulf %11, %8 : vector<16x512xf32>
    %13 = arith.mulf %12, %8 : vector<16x512xf32>
    %14 = arith.mulf %13, %8 : vector<16x512xf32>
    %15 = arith.addf %8, %14 : vector<16x512xf32>
    %cst_8 = arith.constant 0.797884583 : f32
    %16 = vector.broadcast %cst_8 : f32 to vector<16x512xf32>
    %17 = arith.mulf %16, %15 : vector<16x512xf32>
    %18 = math.tanh %17 : vector<16x512xf32>
    %cst_9 = arith.constant 1.000000e+00 : f32
    %19 = vector.broadcast %cst_9 : f32 to vector<16x512xf32>
    %20 = arith.addf %19, %18 : vector<16x512xf32>
    %21 = arith.mulf %10, %20 : vector<16x512xf32>
    %c0_10 = arith.constant 0 : index
    %c0_11 = arith.constant 0 : index
    %22 = vector.load %arg8[%c0_10, %c0_11] : memref<16x128xf32, #tpu.memory_space<vmem>>, vector<16x128xf32>
    %c0_12 = arith.constant 0 : index
    %c0_13 = arith.constant 0 : index
    %23 = vector.load %arg5[%c0_12, %c0_13] : memref<512x128xf32, #tpu.memory_space<vmem>>, vector<512x128xf32>
    %cst_14 = arith.constant dense<0.000000e+00> : vector<16x128xf32>
    %24 = tpu.matmul %21, %23, %cst_14 {dimension_numbers = #tpu.dot_dimension_numbers<[1], [0], [0], [1], [0, 0, 1, 1], [], []>} : vector<16x512xf32>, vector<512x128xf32>, vector<16x128xf32> -> vector<16x128xf32>
    %25 = arith.addf %22, %24 : vector<16x128xf32>
    %c0_15 = arith.constant 0 : index
    %c0_16 = arith.constant 0 : index
    %26 = vector.load %arg8[%c0_15, %c0_16] : memref<16x128xf32, #tpu.memory_space<vmem>>, vector<16x128xf32>
    tpu.vector_store %arg8[%c0_15, %c0_16], %25 {strides = array<i32>} : memref<16x128xf32, #tpu.memory_space<vmem>>, vector<16x128xf32>,
    %c0_i32_17 = arith.constant 0 : i32
    %27 = arith.cmpi eq, %arg1, %c0_i32_17 : i32
    %28 = arith.extui %27 : i1 to i32
    %c0_i32_18 = arith.constant 0 : i32
    %29 = arith.cmpi ne, %28, %c0_i32_18 : i32
    scf.if %29 {
      %c0_19 = arith.constant 0 : index
      %c0_20 = arith.constant 0 : index
      %30 = vector.load %arg8[%c0_19, %c0_20] : memref<16x128xf32, #tpu.memory_space<vmem>>, vector<16x128xf32>
      %c0_21 = arith.constant 0 : index
      %c0_22 = arith.constant 0 : index
      %31 = vector.load %arg7[%c0_21, %c0_22] : memref<16x128xf32, #tpu.memory_space<vmem>>, vector<16x128xf32>
      tpu.vector_store %arg7[%c0_21, %c0_22], %30 {strides = array<i32>} : memref<16x128xf32, #tpu.memory_space<vmem>>, vector<16x128xf32>,
    } else {
    }
    return
  }
  func.func @transform_0(%arg0: i32, %arg1: i32) -> (i32, i32) {
    %c0_i32 = arith.constant 0 : i32
    %c0_i32_0 = arith.constant 0 : i32
    return %arg0, %c0_i32 : i32, i32
  }
  func.func @transform_1(%arg0: i32, %arg1: i32) -> (i32, i32) {
    %c0_i32 = arith.constant 0 : i32
    %c0_i32_0 = arith.constant 0 : i32
    return %c0_i32, %arg1 : i32, i32
  }
  func.func @transform_2(%arg0: i32, %arg1: i32) -> (i32, i32) {
    %c0_i32 = arith.constant 0 : i32
    %c0_i32_0 = arith.constant 0 : i32
    return %c0_i32, %arg1 : i32, i32
  }
  func.func @transform_3(%arg0: i32, %arg1: i32) -> (i32, i32) {
    %c0_i32 = arith.constant 0 : i32
    %c0_i32_0 = arith.constant 0 : i32
    return %arg1, %c0_i32 : i32, i32
  }
  func.func @transform_4(%arg0: i32, %arg1: i32) -> (i32, i32) {
    %c0_i32 = arith.constant 0 : i32
    %c0_i32_0 = arith.constant 0 : i32
    %c0_i32_1 = arith.constant 0 : i32
    return %c0_i32, %c0_i32_0 : i32, i32
  }
  func.func @transform_5(%arg0: i32, %arg1: i32) -> (i32, i32) {
    %c0_i32 = arith.constant 0 : i32
    %c0_i32_0 = arith.constant 0 : i32
    return %arg0, %c0_i32 : i32, i32
  }
}

</mosaic_0001>

<llo_original>
// kernel: feed_forward.1
$region0: #{feed_forward.1}
  #allocation0 [shape = 'u32[]', space=smem, size = 0x4, offset = 0x4, fixed_abs, tag = 'smem constant byte address 0x4 - core index']
  #allocation1 [shape = 'u32[144,128]{1,0:T(1,128)}', space=vmem, size = 0x12000, scoped, tag = 'internal scratch']
  #allocation2 [shape = 'f32[16,128]{1,0:T(8,128)}', space=vmem, size = 0x2000, scoped, tag = 'scratch operand']
  %s0 = inlined_call_operand.hbm [shape: f32[16,128], index: 0, kind: input, shape index: {}]
  %s1 = inlined_call_operand.hbm [shape: f32[128,512], index: 1, kind: input, shape index: {}]
  %s2 = inlined_call_operand.hbm [shape: f32[1,512], index: 2, kind: input, shape index: {}]
  %s3 = inlined_call_operand.hbm [shape: f32[512,128], index: 3, kind: input, shape index: {}]
  %s4 = inlined_call_operand.hbm [shape: f32[1,128], index: 4, kind: input, shape index: {}]
  %s5 = inlined_call_operand.hbm [shape: f32[16,128], index: 5, kind: output, shape index: {}]
  %s6 = sld [smem:[#allocation0]]
  $region58: #{feed_forward.1} parent=0
    _
  %s8 = ssub.s32 1, %s6
  %s9 = scalar_select 0, %s8, %s6
  $region1: #{feed_forward.1} parent=0
    #allocation3 [shape = 'u8[8192]{0}', space=vmem, size = 0x2000, scoped, tag = 'input window, operand 0, single buffered']
    #allocation4 [shape = 's32[1]{0}', space=sflag, size = 0x4, scoped, tag = 'scoped memory for feed_forward.1']
    #allocation5 [shape = 's32[1]{0}', space=sflag, size = 0x4, scoped, tag = 'scoped memory for feed_forward.1']
    #allocation6 [shape = 'u8[262144]{0}', space=vmem, size = 0x40000, scoped, tag = 'input window, operand 1, single buffered']
    #allocation7 [shape = 's32[1]{0}', space=sflag, size = 0x4, scoped, tag = 'scoped memory for feed_forward.1']
    #allocation8 [shape = 'u8[2048]{0}', space=vmem, size = 0x800, scoped, tag = 'input window, operand 2, single buffered']
    #allocation9 [shape = 'u8[262144]{0}', space=vmem, size = 0x40000, scoped, tag = 'input window, operand 3, single buffered']
    #allocation10 [shape = 's32[1]{0}', space=sflag, size = 0x4, scoped, tag = 'scoped memory for feed_forward.1']
    #allocation11 [shape = 'u8[512]{0}', space=vmem, size = 0x400, scoped, tag = 'input window, operand 4, single buffered']
    #allocation12 [shape = 'u8[8192]{0}', space=vmem, size = 0x2000, scoped, tag = 'output window, operand 0, single buffered']
    %10 = vsyncpa [#allocation4], 0
    %11 = vsyncpa [#allocation7], 0
    %12 = vsyncpa [#allocation10], 0
    %13 = vsyncpa [#allocation5], 0
    // Predicated region
    $region2: #{feed_forward.1} parent=1 // pred_check
      _
    $region3: #{feed_forward.1} parent=1 // pred_check_branch
      %15 = sbr.rel (0) target = $region5
    $region4: #{feed_forward.1} parent=1 // pred_region
      %s17 = ssub.s32 256, 256
      %18 = vsyncadd [#allocation4], %s17
      %s19 = sshll.u32 [#allocation3], 4
      %s20 = int_to_ptr.vmem [resolvable:$true] %s19
      %25 = dma.hbm_to_vmem [thread:$0]  %s0, 256, %s20, [#allocation4], 128, 128, 8
    $region5: #{feed_forward.1} parent=1 // pred_fallthru
      _
    // Predicated region
    $region6: #{feed_forward.1} parent=1 // pred_check
      _
    $region7: #{feed_forward.1} parent=1 // pred_check_branch
      %27 = sbr.rel (0) target = $region9
    $region8: #{feed_forward.1} parent=1 // pred_region
      %s29 = ssub.s32 8192, 8192
      %30 = vsyncadd [#allocation7], %s29
      %s31 = sshll.u32 [#allocation6], 4
      %s32 = int_to_ptr.vmem [resolvable:$true] %s31
      %37 = dma.hbm_to_vmem [thread:$0]  %s1, 8192, %s32, [#allocation7], 512, 512, 32
    $region9: #{feed_forward.1} parent=1 // pred_fallthru
      _
    // Predicated region
    $region10: #{feed_forward.1} parent=1 // pred_check
      _
    $region11: #{feed_forward.1} parent=1 // pred_check_branch
      %39 = sbr.rel (0) target = $region13
    $region12: #{feed_forward.1} parent=1 // pred_region
      %s41 = ssub.s32 64, 64
      %42 = vsyncadd [#allocation7], %s41
      %s44 = sshll.u32 [#allocation8], 4
      %s45 = int_to_ptr.vmem [resolvable:$true] %s44
      %47 = dma.hbm_to_vmem [thread:$0]  %s2, 64, %s45, [#allocation7]
    $region13: #{feed_forward.1} parent=1 // pred_fallthru
      _
    // Predicated region
    $region14: #{feed_forward.1} parent=1 // pred_check
      _
    $region15: #{feed_forward.1} parent=1 // pred_check_branch
      %49 = sbr.rel (0) target = $region17
    $region16: #{feed_forward.1} parent=1 // pred_region
      %s51 = ssub.s32 8192, 8192
      %52 = vsyncadd [#allocation10], %s51
      %s53 = sshll.u32 [#allocation9], 4
      %s54 = int_to_ptr.vmem [resolvable:$true] %s53
      %59 = dma.hbm_to_vmem [thread:$0]  %s3, 8192, %s54, [#allocation10], 128, 128, 8
    $region17: #{feed_forward.1} parent=1 // pred_fallthru
      _
    // Predicated region
    $region18: #{feed_forward.1} parent=1 // pred_check
      _
    $region19: #{feed_forward.1} parent=1 // pred_check_branch
      %61 = sbr.rel (0) target = $region21
    $region20: #{feed_forward.1} parent=1 // pred_region
      %s63 = ssub.s32 16, 16
      %64 = vsyncadd [#allocation10], %s63
      %s66 = sshll.u32 [#allocation11], 4
      %s67 = int_to_ptr.vmem [resolvable:$true] %s66
      %69 = dma.hbm_to_vmem [thread:$0]  %s4, 16, %s67, [#allocation10]
    $region21: #{feed_forward.1} parent=1 // pred_fallthru
      _
    // Predicated region
    $region22: #{feed_forward.1} parent=1 // pred_check
      _
    $region23: #{feed_forward.1} parent=1 // pred_check_branch
      %71 = sbr.rel (0) target = $region25
    $region24: #{feed_forward.1} parent=1 // pred_region
      %72 = dma.done [#allocation4], 256
    $region25: #{feed_forward.1} parent=1 // pred_fallthru
      _
    // Predicated region
    $region26: #{feed_forward.1} parent=1 // pred_check
      _
    $region27: #{feed_forward.1} parent=1 // pred_check_branch
      %74 = sbr.rel (0) target = $region29
    $region28: #{feed_forward.1} parent=1 // pred_region
      %75 = dma.done [#allocation7], 8192
    $region29: #{feed_forward.1} parent=1 // pred_fallthru
      _
    // Predicated region
    $region30: #{feed_forward.1} parent=1 // pred_check
      _
    $region31: #{feed_forward.1} parent=1 // pred_check_branch
      %77 = sbr.rel (0) target = $region33
    $region32: #{feed_forward.1} parent=1 // pred_region
      %78 = dma.done [#allocation7], 64
    $region33: #{feed_forward.1} parent=1 // pred_fallthru
      _
    // Predicated region
    $region34: #{feed_forward.1} parent=1 // pred_check
      _
    $region35: #{feed_forward.1} parent=1 // pred_check_branch
      %80 = sbr.rel (0) target = $region37
    $region36: #{feed_forward.1} parent=1 // pred_region
      %81 = dma.done [#allocation10], 8192
    $region37: #{feed_forward.1} parent=1 // pred_fallthru
      _
    // Predicated region
    $region38: #{feed_forward.1} parent=1 // pred_check
      _
    $region39: #{feed_forward.1} parent=1 // pred_check_branch
      %83 = sbr.rel (0) target = $region41
    $region40: #{feed_forward.1} parent=1 // pred_region
      %84 = dma.done [#allocation10], 16
    $region41: #{feed_forward.1} parent=1 // pred_fallthru
      _
    %p85 = scmp.eq.s32.totalorder 0, 0
    // Predicated region
    $region42: #{feed_forward.1} parent=1 // pred_check
      %p86 = pneg %p85
    $region43: #{feed_forward.1} parent=1 // pred_check_branch
      %88 = sbr.rel (%p86) target = $region45
    $region44: #{feed_forward.1} parent=1 // pred_region
      %v89 = vld [vmem:[#allocation11] sm:$0x1]
      %v91 = vlaneseq
      %v92 = vshrl.u32 %v91, 7
      %v93 = vsub.s32 0, %v92
      %v94 = vrot.slane %v89, %v93
      %96 = vst [vmem:[#allocation2] sm:$0xff] %v94
      %97 = vst [vmem:[#allocation2 + $0x8] sm:$0xff] %v94
    $region45: #{feed_forward.1} parent=1 // pred_fallthru
      _
    %v98 = vld [vmem:[#allocation3] sm:$0xff]
    %v99 = vld [vmem:[#allocation3 + $0x8] sm:$0xff]
    %v100 = vld [vmem:[#allocation6] sm:$0xff]
    %v101 = vld [vmem:[#allocation6 + $0x8] sm:$0xff]
    %v102 = vld [vmem:[#allocation6 + $0x10] sm:$0xff]
    %v103 = vld [vmem:[#allocation6 + $0x18] sm:$0xff]
    %v104 = vld [vmem:[#allocation6 + $0x20] sm:$0xff]
    %v105 = vld [vmem:[#allocation6 + $0x28] sm:$0xff]
    %v106 = vld [vmem:[#allocation6 + $0x30] sm:$0xff]
    %v107 = vld [vmem:[#allocation6 + $0x38] sm:$0xff]
    %v108 = vld [vmem:[#allocation6 + $0x40] sm:$0xff]
    %v109 = vld [vmem:[#allocation6 + $0x48] sm:$0xff]
    %v110 = vld [vmem:[#allocation6 + $0x50] sm:$0xff]
    %v111 = vld [vmem:[#allocation6 + $0x58] sm:$0xff]
    %v112 = vld [vmem:[#allocation6 + $0x60] sm:$0xff]
    %v113 = vld [vmem:[#allocation6 + $0x68] sm:$0xff]
    %v114 = vld [vmem:[#allocation6 + $0x70] sm:$0xff]
    %v115 = vld [vmem:[#allocation6 + $0x78] sm:$0xff]
    %v116 = vld [vmem:[#allocation6 + $0x80] sm:$0xff]
    %v117 = vld [vmem:[#allocation6 + $0x88] sm:$0xff]
    %v118 = vld [vmem:[#allocation6 + $0x90] sm:$0xff]
    %v119 = vld [vmem:[#allocation6 + $0x98] sm:$0xff]
    %v120 = vld [vmem:[#allocation6 + $0xa0] sm:$0xff]
    %v121 = vld [vmem:[#allocation6 + $0xa8] sm:$0xff]
    %v122 = vld [vmem:[#allocation6 + $0xb0] sm:$0xff]
    %v123 = vld [vmem:[#allocation6 + $0xb8] sm:$0xff]
    %v124 = vld [vmem:[#allocation6 + $0xc0] sm:$0xff]
    %v125 = vld [vmem:[#allocation6 + $0xc8] sm:$0xff]
    %v126 = vld [vmem:[#allocation6 + $0xd0] sm:$0xff]
    %v127 = vld [vmem:[#allocation6 + $0xd8] sm:$0xff]
    %v128 = vld [vmem:[#allocation6 + $0xe0] sm:$0xff]
    %v129 = vld [vmem:[#allocation6 + $0xe8] sm:$0xff]
    %v130 = vld [vmem:[#allocation6 + $0xf0] sm:$0xff]
    %v131 = vld [vmem:[#allocation6 + $0xf8] sm:$0xff]
    %v132 = vld [vmem:[#allocation6 + $0x100] sm:$0xff]
    %v133 = vld [vmem:[#allocation6 + $0x108] sm:$0xff]
    %v134 = vld [vmem:[#allocation6 + $0x110] sm:$0xff]
    %v135 = vld [vmem:[#allocation6 + $0x118] sm:$0xff]
    %v136 = vld [vmem:[#allocation6 + $0x120] sm:$0xff]
    %v137 = vld [vmem:[#allocation6 + $0x128] sm:$0xff]
    %v138 = vld [vmem:[#allocation6 + $0x130] sm:$0xff]
    %v139 = vld [vmem:[#allocation6 + $0x138] sm:$0xff]
    %v140 = vld [vmem:[#allocation6 + $0x140] sm:$0xff]
    %v141 = vld [vmem:[#allocation6 + $0x148] sm:$0xff]
    %v142 = vld [vmem:[#allocation6 + $0x150] sm:$0xff]
    %v143 = vld [vmem:[#allocation6 + $0x158] sm:$0xff]
    %v144 = vld [vmem:[#allocation6 + $0x160] sm:$0xff]
    %v145 = vld [vmem:[#allocation6 + $0x168] sm:$0xff]
    %v146 = vld [vmem:[#allocation6 + $0x170] sm:$0xff]
    %v147 = vld [vmem:[#allocation6 + $0x178] sm:$0xff]
    %v148 = vld [vmem:[#allocation6 + $0x180] sm:$0xff]
    %v149 = vld [vmem:[#allocation6 + $0x188] sm:$0xff]
    %v150 = vld [vmem:[#allocation6 + $0x190] sm:$0xff]
    %v151 = vld [vmem:[#allocation6 + $0x198] sm:$0xff]
    %v152 = vld [vmem:[#allocation6 + $0x1a0] sm:$0xff]
    %v153 = vld [vmem:[#allocation6 + $0x1a8] sm:$0xff]
    %v154 = vld [vmem:[#allocation6 + $0x1b0] sm:$0xff]
    %v155 = vld [vmem:[#allocation6 + $0x1b8] sm:$0xff]
    %v156 = vld [vmem:[#allocation6 + $0x1c0] sm:$0xff]
    %v157 = vld [vmem:[#allocation6 + $0x1c8] sm:$0xff]
    %v158 = vld [vmem:[#allocation6 + $0x1d0] sm:$0xff]
    %v159 = vld [vmem:[#allocation6 + $0x1d8] sm:$0xff]
    %v160 = vld [vmem:[#allocation6 + $0x1e0] sm:$0xff]
    %v161 = vld [vmem:[#allocation6 + $0x1e8] sm:$0xff]
    %v162 = vld [vmem:[#allocation6 + $0x1f0] sm:$0xff]
    %v163 = vld [vmem:[#allocation6 + $0x1f8] sm:$0xff]
    %v164 = vld [vmem:[#allocation8] sm:$0xf]
    %v166 = vlaneseq
    %v167 = vshrl.u32 %v166, 7
    %v168 = vsub.s32 0, %v167
    %v169 = vrot.slane %v164, %v168
    %v170 = vlaneseq
    %v171 = vshrl.u32 %v170, 7
    %v172 = vsub.s32 1, %v171
    %v173 = vrot.slane %v164, %v172
    %v174 = vlaneseq
    %v175 = vshrl.u32 %v174, 7
    %v176 = vsub.s32 2, %v175
    %v177 = vrot.slane %v164, %v176
    %v178 = vlaneseq
    %v179 = vshrl.u32 %v178, 7
    %v180 = vsub.s32 3, %v179
    %v181 = vrot.slane %v164, %v180
    %186 = vmatprep.subr.mxu0 %v101
    %187 = vmatpush1.msra.mxu0 %v100
    %188 = vmatprep.subr.mxu0 %v105
    %189 = vmatpush1.msra.mxu0 %v104
    %190 = vmatprep.subr.mxu0 %v109
    %191 = vmatpush1.msra.mxu0 %v108
    %192 = vmatprep.subr.mxu0 %v113
    %193 = vmatpush1.msra.mxu0 %v112
    %194 = vmatprep.subr.mxu0 %v117
    %195 = vmatpush1.msra.mxu0 %v116
    %196 = vmatprep.subr.mxu0 %v121
    %197 = vmatpush1.msra.mxu0 %v120
    %198 = vmatprep.subr.mxu0 %v125
    %199 = vmatpush1.msra.mxu0 %v124
    %200 = vmatprep.subr.mxu0 %v129
    %201 = vmatpush1.msra.mxu0 %v128
    %202 = vmatprep.subr.mxu0 %v133
    %203 = vmatpush1.msra.mxu0 %v132
    %204 = vmatprep.subr.mxu0 %v137
    %205 = vmatpush1.msra.mxu0 %v136
    %206 = vmatprep.subr.mxu0 %v141
    %207 = vmatpush1.msra.mxu0 %v140
    %208 = vmatprep.subr.mxu0 %v145
    %209 = vmatpush1.msra.mxu0 %v144
    %210 = vmatprep.subr.mxu0 %v149
    %211 = vmatpush1.msra.mxu0 %v148
    %212 = vmatprep.subr.mxu0 %v153
    %213 = vmatpush1.msra.mxu0 %v152
    %214 = vmatprep.subr.mxu0 %v157
    %215 = vmatpush1.msra.mxu0 %v156
    %216 = vmatprep.subr.mxu0 %v161
    %217 = vmatpush1.msra.mxu0 %v160
    %218 = vmatprep.subr.mxu0 0.0
    %219 = vmatpush1.msra.mxu0 0.0
    %220 = vmatprep.subr.mxu0 0.0
    %221 = vmatpush1.msra.mxu0 0.0
    %222 = vmatprep.subr.mxu0 0.0
    %223 = vmatpush1.msra.mxu0 0.0
    %224 = vmatprep.subr.mxu0 0.0
    %225 = vmatpush1.msra.mxu0 0.0
    %226 = vmatprep.subr.mxu0 0.0
    %227 = vmatpush1.msra.mxu0 0.0
    %228 = vmatprep.subr.mxu0 0.0
    %229 = vmatpush1.msra.mxu0 0.0
    %230 = vmatprep.subr.mxu0 0.0
    %231 = vmatpush1.msra.mxu0 0.0
    %232 = vmatprep.subr.mxu0 0.0
    %233 = vmatpush1.msra.mxu0 0.0
    %234 = vmatprep.subr.mxu0 0.0
    %235 = vmatpush1.msra.mxu0 0.0
    %236 = vmatprep.subr.mxu0 0.0
    %237 = vmatpush1.msra.mxu0 0.0
    %238 = vmatprep.subr.mxu0 0.0
    %239 = vmatpush1.msra.mxu0 0.0
    %240 = vmatprep.subr.mxu0 0.0
    %241 = vmatpush1.msra.mxu0 0.0
    %242 = vmatprep.subr.mxu0 0.0
    %243 = vmatpush1.msra.mxu0 0.0
    %244 = vmatprep.subr.mxu0 0.0
    %245 = vmatpush1.msra.mxu0 0.0
    %246 = vmatprep.subr.mxu0 0.0
    %247 = vmatpush1.msra.mxu0 0.0
    %248 = vmatprep.subr.mxu0 0.0
    %249 = vmatpush1.msra.mxu0 0.0
    %250 = vmatprep.mubr.f32.mxu0 0.0
    %251 = vmatmul.mubr.f32.gmra.mrb[0].mxu0 %v98
    %v252 = vpop.f32.mrb[0].mxu0
    %v253 = vadd.f32 %v169, %v252
    %v254 = vpop.f32.mrb[0].mxu0
    %v255 = vadd.f32 %v173, %v254
    %256 = vmatprep.mubr.f32.mxu0 0.0
    %257 = vmatmul.mubr.f32.gmra.mrb[0].mxu0 %v99
    %v258 = vpop.f32.mrb[0].mxu0
    %v259 = vadd.f32 %v169, %v258
    %v260 = vpop.f32.mrb[0].mxu0
    %v261 = vadd.f32 %v173, %v260
    %262 = vdwg.mxu0
    %263 = vmatprep.subr.mxu0 %v103
    %264 = vmatpush1.msra.mxu0 %v102
    %265 = vmatprep.subr.mxu0 %v107
    %266 = vmatpush1.msra.mxu0 %v106
    %267 = vmatprep.subr.mxu0 %v111
    %268 = vmatpush1.msra.mxu0 %v110
    %269 = vmatprep.subr.mxu0 %v115
    %270 = vmatpush1.msra.mxu0 %v114
    %271 = vmatprep.subr.mxu0 %v119
    %272 = vmatpush1.msra.mxu0 %v118
    %273 = vmatprep.subr.mxu0 %v123
    %274 = vmatpush1.msra.mxu0 %v122
    %275 = vmatprep.subr.mxu0 %v127
    %276 = vmatpush1.msra.mxu0 %v126
    %277 = vmatprep.subr.mxu0 %v131
    %278 = vmatpush1.msra.mxu0 %v130
    %279 = vmatprep.subr.mxu0 %v135
    %280 = vmatpush1.msra.mxu0 %v134
    %281 = vmatprep.subr.mxu0 %v139
    %282 = vmatpush1.msra.mxu0 %v138
    %283 = vmatprep.subr.mxu0 %v143
    %284 = vmatpush1.msra.mxu0 %v142
    %285 = vmatprep.subr.mxu0 %v147
    %286 = vmatpush1.msra.mxu0 %v146
    %287 = vmatprep.subr.mxu0 %v151
    %288 = vmatpush1.msra.mxu0 %v150
    %289 = vmatprep.subr.mxu0 %v155
    %290 = vmatpush1.msra.mxu0 %v154
    %291 = vmatprep.subr.mxu0 %v159
    %292 = vmatpush1.msra.mxu0 %v158
    %293 = vmatprep.subr.mxu0 %v163
    %294 = vmatpush1.msra.mxu0 %v162
    %295 = vmatprep.subr.mxu0 0.0
    %296 = vmatpush1.msra.mxu0 0.0
    %297 = vmatprep.subr.mxu0 0.0
    %298 = vmatpush1.msra.mxu0 0.0
    %299 = vmatprep.subr.mxu0 0.0
    %300 = vmatpush1.msra.mxu0 0.0
    %301 = vmatprep.subr.mxu0 0.0
    %302 = vmatpush1.msra.mxu0 0.0
    %303 = vmatprep.subr.mxu0 0.0
    %304 = vmatpush1.msra.mxu0 0.0
    %305 = vmatprep.subr.mxu0 0.0
    %306 = vmatpush1.msra.mxu0 0.0
    %307 = vmatprep.subr.mxu0 0.0
    %308 = vmatpush1.msra.mxu0 0.0
    %309 = vmatprep.subr.mxu0 0.0
    %310 = vmatpush1.msra.mxu0 0.0
    %311 = vmatprep.subr.mxu0 0.0
    %312 = vmatpush1.msra.mxu0 0.0
    %313 = vmatprep.subr.mxu0 0.0
    %314 = vmatpush1.msra.mxu0 0.0
    %315 = vmatprep.subr.mxu0 0.0
    %316 = vmatpush1.msra.mxu0 0.0
    %317 = vmatprep.subr.mxu0 0.0
    %318 = vmatpush1.msra.mxu0 0.0
    %319 = vmatprep.subr.mxu0 0.0
    %320 = vmatpush1.msra.mxu0 0.0
    %321 = vmatprep.subr.mxu0 0.0
    %322 = vmatpush1.msra.mxu0 0.0
    %323 = vmatprep.subr.mxu0 0.0
    %324 = vmatpush1.msra.mxu0 0.0
    %325 = vmatprep.subr.mxu0 0.0
    %326 = vmatpush1.msra.mxu0 0.0
    %327 = vmatprep.mubr.f32.mxu0 0.0
    %328 = vmatmul.mubr.f32.gmra.mrb[0].mxu0 %v98
    %v329 = vpop.f32.mrb[0].mxu0
    %v330 = vadd.f32 %v177, %v329
    %v331 = vpop.f32.mrb[0].mxu0
    %v332 = vadd.f32 %v181, %v331
    %333 = vmatprep.mubr.f32.mxu0 0.0
    %334 = vmatmul.mubr.f32.gmra.mrb[0].mxu0 %v99
    %v335 = vpop.f32.mrb[0].mxu0
    %v336 = vadd.f32 %v177, %v335
    %v337 = vpop.f32.mrb[0].mxu0
    %v338 = vadd.f32 %v181, %v337
    %339 = vdwg.mxu0
    %v340 = vmul.f32 %v253, 0.5
    %v341 = vmul.f32 %v255, 0.5
    %v342 = vmul.f32 %v330, 0.5
    %v343 = vmul.f32 %v332, 0.5
    %v344 = vmul.f32 %v259, 0.5
    %v345 = vmul.f32 %v261, 0.5
    %v346 = vmul.f32 %v336, 0.5
    %v347 = vmul.f32 %v338, 0.5
    %v348 = vmul.f32 %v253, 0.044715
    %v349 = vmul.f32 %v255, 0.044715
    %v350 = vmul.f32 %v330, 0.044715
    %v351 = vmul.f32 %v332, 0.044715
    %v352 = vmul.f32 %v259, 0.044715
    %v353 = vmul.f32 %v261, 0.044715
    %v354 = vmul.f32 %v336, 0.044715
    %v355 = vmul.f32 %v338, 0.044715
    %v356 = vmul.f32 %v348, %v253
    %v357 = vmul.f32 %v349, %v255
    %v358 = vmul.f32 %v350, %v330
    %v359 = vmul.f32 %v351, %v332
    %v360 = vmul.f32 %v352, %v259
    %v361 = vmul.f32 %v353, %v261
    %v362 = vmul.f32 %v354, %v336
    %v363 = vmul.f32 %v355, %v338
    %v364 = vmul.f32 %v356, %v253
    %v365 = vmul.f32 %v357, %v255
    %v366 = vmul.f32 %v358, %v330
    %v367 = vmul.f32 %v359, %v332
    %v368 = vmul.f32 %v360, %v259
    %v369 = vmul.f32 %v361, %v261
    %v370 = vmul.f32 %v362, %v336
    %v371 = vmul.f32 %v363, %v338
    %v372 = vadd.f32 %v253, %v364
    %v373 = vadd.f32 %v255, %v365
    %v374 = vadd.f32 %v330, %v366
    %v375 = vadd.f32 %v332, %v367
    %v376 = vadd.f32 %v259, %v368
    %v377 = vadd.f32 %v261, %v369
    %v378 = vadd.f32 %v336, %v370
    %v379 = vadd.f32 %v338, %v371
    %v380 = vmul.f32 %v372, 0.7978846
    %v381 = vmul.f32 %v373, 0.7978846
    %v382 = vmul.f32 %v374, 0.7978846
    %v383 = vmul.f32 %v375, 0.7978846
    %v384 = vmul.f32 %v376, 0.7978846
    %v385 = vmul.f32 %v377, 0.7978846
    %v386 = vmul.f32 %v378, 0.7978846
    %v387 = vmul.f32 %v379, 0.7978846
    %v388 = vtanh.pop %v380
    %v389 = vtanh.pop %v381
    %v390 = vtanh.pop %v382
    %v391 = vtanh.pop %v383
    %v392 = vtanh.pop %v384
    %v393 = vtanh.pop %v385
    %v394 = vtanh.pop %v386
    %v395 = vtanh.pop %v387
    %v396 = vadd.f32 %v388, 1.0
    %v397 = vadd.f32 %v389, 1.0
    %v398 = vadd.f32 %v390, 1.0
    %v399 = vadd.f32 %v391, 1.0
    %v400 = vadd.f32 %v392, 1.0
    %v401 = vadd.f32 %v393, 1.0
    %v402 = vadd.f32 %v394, 1.0
    %v403 = vadd.f32 %v395, 1.0
    %v404 = vmul.f32 %v340, %v396
    %v405 = vmul.f32 %v341, %v397
    %v406 = vmul.f32 %v342, %v398
    %v407 = vmul.f32 %v343, %v399
    %v408 = vmul.f32 %v344, %v400
    %v409 = vmul.f32 %v345, %v401
    %v410 = vmul.f32 %v346, %v402
    %v411 = vmul.f32 %v347, %v403
    %v412 = vld [vmem:[#allocation2] sm:$0xff]
    %v413 = vld [vmem:[#allocation2 + $0x8] sm:$0xff]
    %v414 = vld [vmem:[#allocation9] sm:$0xff]
    %v415 = vld [vmem:[#allocation9 + $0x8] sm:$0xff]
    %v416 = vld [vmem:[#allocation9 + $0x10] sm:$0xff]
    %v417 = vld [vmem:[#allocation9 + $0x18] sm:$0xff]
    %v418 = vld [vmem:[#allocation9 + $0x20] sm:$0xff]
    %v419 = vld [vmem:[#allocation9 + $0x28] sm:$0xff]
    %v420 = vld [vmem:[#allocation9 + $0x30] sm:$0xff]
    %v421 = vld [vmem:[#allocation9 + $0x38] sm:$0xff]
    %v422 = vld [vmem:[#allocation9 + $0x40] sm:$0xff]
    %v423 = vld [vmem:[#allocation9 + $0x48] sm:$0xff]
    %v424 = vld [vmem:[#allocation9 + $0x50] sm:$0xff]
    %v425 = vld [vmem:[#allocation9 + $0x58] sm:$0xff]
    %v426 = vld [vmem:[#allocation9 + $0x60] sm:$0xff]
    %v427 = vld [vmem:[#allocation9 + $0x68] sm:$0xff]
    %v428 = vld [vmem:[#allocation9 + $0x70] sm:$0xff]
    %v429 = vld [vmem:[#allocation9 + $0x78] sm:$0xff]
    %v430 = vld [vmem:[#allocation9 + $0x80] sm:$0xff]
    %v431 = vld [vmem:[#allocation9 + $0x88] sm:$0xff]
    %v432 = vld [vmem:[#allocation9 + $0x90] sm:$0xff]
    %v433 = vld [vmem:[#allocation9 + $0x98] sm:$0xff]
    %v434 = vld [vmem:[#allocation9 + $0xa0] sm:$0xff]
    %v435 = vld [vmem:[#allocation9 + $0xa8] sm:$0xff]
    %v436 = vld [vmem:[#allocation9 + $0xb0] sm:$0xff]
    %v437 = vld [vmem:[#allocation9 + $0xb8] sm:$0xff]
    %v438 = vld [vmem:[#allocation9 + $0xc0] sm:$0xff]
    %v439 = vld [vmem:[#allocation9 + $0xc8] sm:$0xff]
    %v440 = vld [vmem:[#allocation9 + $0xd0] sm:$0xff]
    %v441 = vld [vmem:[#allocation9 + $0xd8] sm:$0xff]
    %v442 = vld [vmem:[#allocation9 + $0xe0] sm:$0xff]
    %v443 = vld [vmem:[#allocation9 + $0xe8] sm:$0xff]
    %v444 = vld [vmem:[#allocation9 + $0xf0] sm:$0xff]
    %v445 = vld [vmem:[#allocation9 + $0xf8] sm:$0xff]
    %v446 = vld [vmem:[#allocation9 + $0x100] sm:$0xff]
    %v447 = vld [vmem:[#allocation9 + $0x108] sm:$0xff]
    %v448 = vld [vmem:[#allocation9 + $0x110] sm:$0xff]
    %v449 = vld [vmem:[#allocation9 + $0x118] sm:$0xff]
    %v450 = vld [vmem:[#allocation9 + $0x120] sm:$0xff]
    %v451 = vld [vmem:[#allocation9 + $0x128] sm:$0xff]
    %v452 = vld [vmem:[#allocation9 + $0x130] sm:$0xff]
    %v453 = vld [vmem:[#allocation9 + $0x138] sm:$0xff]
    %v454 = vld [vmem:[#allocation9 + $0x140] sm:$0xff]
    %v455 = vld [vmem:[#allocation9 + $0x148] sm:$0xff]
    %v456 = vld [vmem:[#allocation9 + $0x150] sm:$0xff]
    %v457 = vld [vmem:[#allocation9 + $0x158] sm:$0xff]
    %v458 = vld [vmem:[#allocation9 + $0x160] sm:$0xff]
    %v459 = vld [vmem:[#allocation9 + $0x168] sm:$0xff]
    %v460 = vld [vmem:[#allocation9 + $0x170] sm:$0xff]
    %v461 = vld [vmem:[#allocation9 + $0x178] sm:$0xff]
    %v462 = vld [vmem:[#allocation9 + $0x180] sm:$0xff]
    %v463 = vld [vmem:[#allocation9 + $0x188] sm:$0xff]
    %v464 = vld [vmem:[#allocation9 + $0x190] sm:$0xff]
    %v465 = vld [vmem:[#allocation9 + $0x198] sm:$0xff]
    %v466 = vld [vmem:[#allocation9 + $0x1a0] sm:$0xff]
    %v467 = vld [vmem:[#allocation9 + $0x1a8] sm:$0xff]
    %v468 = vld [vmem:[#allocation9 + $0x1b0] sm:$0xff]
    %v469 = vld [vmem:[#allocation9 + $0x1b8] sm:$0xff]
    %v470 = vld [vmem:[#allocation9 + $0x1c0] sm:$0xff]
    %v471 = vld [vmem:[#allocation9 + $0x1c8] sm:$0xff]
    %v472 = vld [vmem:[#allocation9 + $0x1d0] sm:$0xff]
    %v473 = vld [vmem:[#allocation9 + $0x1d8] sm:$0xff]
    %v474 = vld [vmem:[#allocation9 + $0x1e0] sm:$0xff]
    %v475 = vld [vmem:[#allocation9 + $0x1e8] sm:$0xff]
    %v476 = vld [vmem:[#allocation9 + $0x1f0] sm:$0xff]
    %v477 = vld [vmem:[#allocation9 + $0x1f8] sm:$0xff]
    %478 = vmatprep.subr.mxu0 0.0
    %479 = vmatpush1.msra.mxu0 %v414
    %480 = vmatprep.subr.mxu0 0.0
    %481 = vmatpush1.msra.mxu0 %v415
    %482 = vmatprep.subr.mxu0 0.0
    %483 = vmatpush1.msra.mxu0 %v416
    %484 = vmatprep.subr.mxu0 0.0
    %485 = vmatpush1.msra.mxu0 %v417
    %486 = vmatprep.subr.mxu0 0.0
    %487 = vmatpush1.msra.mxu0 %v418
    %488 = vmatprep.subr.mxu0 0.0
    %489 = vmatpush1.msra.mxu0 %v419
    %490 = vmatprep.subr.mxu0 0.0
    %491 = vmatpush1.msra.mxu0 %v420
    %492 = vmatprep.subr.mxu0 0.0
    %493 = vmatpush1.msra.mxu0 %v421
    %494 = vmatprep.subr.mxu0 0.0
    %495 = vmatpush1.msra.mxu0 %v422
    %496 = vmatprep.subr.mxu0 0.0
    %497 = vmatpush1.msra.mxu0 %v423
    %498 = vmatprep.subr.mxu0 0.0
    %499 = vmatpush1.msra.mxu0 %v424
    %500 = vmatprep.subr.mxu0 0.0
    %501 = vmatpush1.msra.mxu0 %v425
    %502 = vmatprep.subr.mxu0 0.0
    %503 = vmatpush1.msra.mxu0 %v426
    %504 = vmatprep.subr.mxu0 0.0
    %505 = vmatpush1.msra.mxu0 %v427
    %506 = vmatprep.subr.mxu0 0.0
    %507 = vmatpush1.msra.mxu0 %v428
    %508 = vmatprep.subr.mxu0 0.0
    %509 = vmatpush1.msra.mxu0 %v429
    %510 = vmatprep.subr.mxu0 0.0
    %511 = vmatpush1.msra.mxu0 %v430
    %512 = vmatprep.subr.mxu0 0.0
    %513 = vmatpush1.msra.mxu0 %v431
    %514 = vmatprep.subr.mxu0 0.0
    %515 = vmatpush1.msra.mxu0 %v432
    %516 = vmatprep.subr.mxu0 0.0
    %517 = vmatpush1.msra.mxu0 %v433
    %518 = vmatprep.subr.mxu0 0.0
    %519 = vmatpush1.msra.mxu0 %v434
    %520 = vmatprep.subr.mxu0 0.0
    %521 = vmatpush1.msra.mxu0 %v435
    %522 = vmatprep.subr.mxu0 0.0
    %523 = vmatpush1.msra.mxu0 %v436
    %524 = vmatprep.subr.mxu0 0.0
    %525 = vmatpush1.msra.mxu0 %v437
    %526 = vmatprep.subr.mxu0 0.0
    %527 = vmatpush1.msra.mxu0 %v438
    %528 = vmatprep.subr.mxu0 0.0
    %529 = vmatpush1.msra.mxu0 %v439
    %530 = vmatprep.subr.mxu0 0.0
    %531 = vmatpush1.msra.mxu0 %v440
    %532 = vmatprep.subr.mxu0 0.0
    %533 = vmatpush1.msra.mxu0 %v441
    %534 = vmatprep.subr.mxu0 0.0
    %535 = vmatpush1.msra.mxu0 %v442
    %536 = vmatprep.subr.mxu0 0.0
    %537 = vmatpush1.msra.mxu0 %v443
    %538 = vmatprep.subr.mxu0 0.0
    %539 = vmatpush1.msra.mxu0 %v444
    %540 = vmatprep.subr.mxu0 0.0
    %541 = vmatpush1.msra.mxu0 %v445
    %542 = vmatprep.mubr.f32.mxu0 %v405
    %543 = vmatmul.mubr.f32.gmra.mrb[0].mxu0 %v404
    %v544 = vpop.f32.mrb[0].mxu0
    %v545 = vadd.f32 0.0, %v544
    %v546 = vpop.f32.mrb[0].mxu0
    %547 = vmatprep.mubr.f32.mxu0 %v409
    %548 = vmatmul.mubr.f32.gmra.mrb[0].mxu0 %v408
    %v549 = vpop.f32.mrb[0].mxu0
    %v550 = vadd.f32 0.0, %v549
    %v551 = vpop.f32.mrb[0].mxu0
    %552 = vdwg.mxu0
    %553 = vmatprep.subr.mxu0 0.0
    %554 = vmatpush1.msra.mxu0 %v446
    %555 = vmatprep.subr.mxu0 0.0
    %556 = vmatpush1.msra.mxu0 %v447
    %557 = vmatprep.subr.mxu0 0.0
    %558 = vmatpush1.msra.mxu0 %v448
    %559 = vmatprep.subr.mxu0 0.0
    %560 = vmatpush1.msra.mxu0 %v449
    %561 = vmatprep.subr.mxu0 0.0
    %562 = vmatpush1.msra.mxu0 %v450
    %563 = vmatprep.subr.mxu0 0.0
    %564 = vmatpush1.msra.mxu0 %v451
    %565 = vmatprep.subr.mxu0 0.0
    %566 = vmatpush1.msra.mxu0 %v452
    %567 = vmatprep.subr.mxu0 0.0
    %568 = vmatpush1.msra.mxu0 %v453
    %569 = vmatprep.subr.mxu0 0.0
    %570 = vmatpush1.msra.mxu0 %v454
    %571 = vmatprep.subr.mxu0 0.0
    %572 = vmatpush1.msra.mxu0 %v455
    %573 = vmatprep.subr.mxu0 0.0
    %574 = vmatpush1.msra.mxu0 %v456
    %575 = vmatprep.subr.mxu0 0.0
    %576 = vmatpush1.msra.mxu0 %v457
    %577 = vmatprep.subr.mxu0 0.0
    %578 = vmatpush1.msra.mxu0 %v458
    %579 = vmatprep.subr.mxu0 0.0
    %580 = vmatpush1.msra.mxu0 %v459
    %581 = vmatprep.subr.mxu0 0.0
    %582 = vmatpush1.msra.mxu0 %v460
    %583 = vmatprep.subr.mxu0 0.0
    %584 = vmatpush1.msra.mxu0 %v461
    %585 = vmatprep.subr.mxu0 0.0
    %586 = vmatpush1.msra.mxu0 %v462
    %587 = vmatprep.subr.mxu0 0.0
    %588 = vmatpush1.msra.mxu0 %v463
    %589 = vmatprep.subr.mxu0 0.0
    %590 = vmatpush1.msra.mxu0 %v464
    %591 = vmatprep.subr.mxu0 0.0
    %592 = vmatpush1.msra.mxu0 %v465
    %593 = vmatprep.subr.mxu0 0.0
    %594 = vmatpush1.msra.mxu0 %v466
    %595 = vmatprep.subr.mxu0 0.0
    %596 = vmatpush1.msra.mxu0 %v467
    %597 = vmatprep.subr.mxu0 0.0
    %598 = vmatpush1.msra.mxu0 %v468
    %599 = vmatprep.subr.mxu0 0.0
    %600 = vmatpush1.msra.mxu0 %v469
    %601 = vmatprep.subr.mxu0 0.0
    %602 = vmatpush1.msra.mxu0 %v470
    %603 = vmatprep.subr.mxu0 0.0
    %604 = vmatpush1.msra.mxu0 %v471
    %605 = vmatprep.subr.mxu0 0.0
    %606 = vmatpush1.msra.mxu0 %v472
    %607 = vmatprep.subr.mxu0 0.0
    %608 = vmatpush1.msra.mxu0 %v473
    %609 = vmatprep.subr.mxu0 0.0
    %610 = vmatpush1.msra.mxu0 %v474
    %611 = vmatprep.subr.mxu0 0.0
    %612 = vmatpush1.msra.mxu0 %v475
    %613 = vmatprep.subr.mxu0 0.0
    %614 = vmatpush1.msra.mxu0 %v476
    %615 = vmatprep.subr.mxu0 0.0
    %616 = vmatpush1.msra.mxu0 %v477
    %617 = vmatprep.mubr.f32.mxu0 %v407
    %618 = vmatmul.mubr.f32.gmra.mrb[0].mxu0 %v406
    %v619 = vpop.f32.mrb[0].mxu0
    %v620 = vadd.f32 %v545, %v619
    %v621 = vpop.f32.mrb[0].mxu0
    %622 = vmatprep.mubr.f32.mxu0 %v411
    %623 = vmatmul.mubr.f32.gmra.mrb[0].mxu0 %v410
    %v624 = vpop.f32.mrb[0].mxu0
    %v625 = vadd.f32 %v550, %v624
    %v626 = vpop.f32.mrb[0].mxu0
    %627 = vdwg.mxu0
    %v628 = vadd.f32 %v412, %v620
    %v629 = vadd.f32 %v413, %v625
    %630 = vst [vmem:[#allocation2] sm:$0xff] %v628
    %631 = vst [vmem:[#allocation2 + $0x8] sm:$0xff] %v629
    // Predicated region
    $region46: #{feed_forward.1} parent=1 // pred_check
      %p632 = pneg %p85
    $region47: #{feed_forward.1} parent=1 // pred_check_branch
      %634 = sbr.rel (%p632) target = $region49
    $region48: #{feed_forward.1} parent=1 // pred_region
      %v635 = vld [vmem:[#allocation2] sm:$0xff]
      %v636 = vld [vmem:[#allocation2 + $0x8] sm:$0xff]
      %637 = vst [vmem:[#allocation12] sm:$0xff] %v635
      %638 = vst [vmem:[#allocation12 + $0x8] sm:$0xff] %v636
    $region49: #{feed_forward.1} parent=1 // pred_fallthru
      _
    // Predicated region
    $region50: #{feed_forward.1} parent=1 // pred_check
      _
    $region51: #{feed_forward.1} parent=1 // pred_check_branch
      %640 = sbr.rel (0) target = $region53
    $region52: #{feed_forward.1} parent=1 // pred_region
      %s642 = ssub.s32 256, 256
      %643 = vsyncadd [#allocation5], %s642
      %s644 = sshll.u32 [#allocation12], 4
      %s645 = int_to_ptr.vmem [resolvable:$true] %s644
      %650 = dma.vmem_to_hbm [thread:$0]  %s645, 256, %s5, [#allocation5], 128, 128, 8
    $region53: #{feed_forward.1} parent=1 // pred_fallthru
      _
    // Predicated region
    $region54: #{feed_forward.1} parent=1 // pred_check
      _
    $region55: #{feed_forward.1} parent=1 // pred_check_branch
      %652 = sbr.rel (0) target = $region57
    $region56: #{feed_forward.1} parent=1 // pred_region
      %653 = dma.done [#allocation5], 256
    $region57: #{feed_forward.1} parent=1 // pred_fallthru
      _
    %654 = vsyncpa [#allocation4], 1
    %655 = vsyncpa [#allocation7], 1
    %656 = vsyncpa [#allocation10], 1
    %657 = vsyncpa [#allocation5], 1

</llo_original>
